<compile_context>
chip_gen: v7x
topology: tpu7x:2x2x1
jax: 0.10.0
libtpu: 0.0.40
codegen_flags: <defaults>
</compile_context>

<pallas_src>
import numpy as np
import jax
import jax.numpy as jnp
from jax import lax
from jax.experimental import pallas as pl
from jax.experimental.pallas import tpu as pltpu


def _forward_kernel(c_ref, g_ref, out_ref):
    # c_ref   : (1, NDP1)       coefficients [alpha_j | beta_j^T flat] for variable j
    # g_ref   : (TILE_I, NDP1)  combined [K_j | grad_K2_j flat] rows for this i-tile
    # out_ref : (1, TILE_I)     lane-dense row-slice of the (d, n) output
    out_ref[...] = lax.dot_general(
        c_ref[...], g_ref[...],
        dimension_numbers=(((1,), (1,)), ((), ())),   # contract over the n*(d+1) axis
        preferred_element_type=jnp.float32)           # (1, TILE_I)


def _pick_tile_i(n, ndp1, itemsize=4, block_budget_bytes=12 << 20):
    """Observation-tile for the streamed G operand.

    The tile must divide n and be either the full axis or a multiple of 128
    (lane-dense output stores, (8,128)-aligned G blocks).  A double-buffered
    (tile, ndp1) f32 block then stays within ~2x block_budget_bytes, sized with
    headroom for v7x's 64 MiB physical VMEM.
    """
    if n * ndp1 * itemsize <= block_budget_bytes:
        return n                                    # whole axis fits in one block
    max_rows = block_budget_bytes // (ndp1 * itemsize)
    best = 0
    t = 128
    while t <= min(n, max_rows):
        if n % t == 0:
            best = t
        t += 128
    if best:
        return best
    # TODO(synk): for very large n*d also tile the flattened (l, a) reduction axis
    # instead of falling back to the full observation axis.
    return n


def admg_rkhs_forward(alpha, beta, G, M, *, tile_i=None):
    """Pallas forward for ADMG_RKHSDagma.

    alpha : (d, n)   beta : (d, d, n)   M : (d, d)
    G     : (d, n, n*(d+1))  build-time constant  [K | grad_K2 flattened over (l, a)]
    returns (output (n, d), Sigma (d, d))  — matching the PyTorch forward().
    """
    d, n = alpha.shape
    ndp1 = n * (d + 1)
    assert G.shape == (d, n, ndp1)

    if tile_i is None:
        tile_i = _pick_tile_i(n, ndp1)
    assert n % tile_i == 0, "tile_i must divide n"
    assert tile_i == n or tile_i % 128 == 0, "tile_i must be n or a multiple of 128"
    grid = (d, n // tile_i)

    # Per-call parameter glue (tiny): c[j] = [alpha[j, :] | beta[j].T.reshape(n*d)],
    # with the (l, a) flattening matching grad_K2.reshape(d, n, n*d).
    beta_t = jnp.transpose(beta, (0, 2, 1)).reshape(d, n * d)         # [j, l*d + a]
    c = jnp.concatenate([alpha, beta_t], axis=1).astype(jnp.float32)  # (d, n*(d+1))
    c = c.reshape(d, 1, ndp1)

    # Explicit VMEM budget: double-buffered G block + (tiny) c and output blocks.
    g_block_bytes = tile_i * ndp1 * 4
    vmem_needed = 2 * (g_block_bytes + ndp1 * 4 + tile_i * 4)
    vmem_limit_bytes = int(min(56 << 20, max(8 << 20, 2 * vmem_needed)))

    out_dn = pl.pallas_call(
        _forward_kernel,
        grid=grid,
        in_specs=[
            pl.BlockSpec((None, 1, ndp1), lambda j, it: (j, 0, 0)),       # c[j]
            pl.BlockSpec((None, tile_i, ndp1), lambda j, it: (j, it, 0)),  # G[j, i-tile]
        ],
        out_specs=pl.BlockSpec((None, 1, tile_i), lambda j, it: (j, 0, it)),
        out_shape=jax.ShapeDtypeStruct((d, 1, n), jnp.float32),
        compiler_params=pltpu.CompilerParams(
            dimension_semantics=("parallel", "parallel"),
            vmem_limit_bytes=vmem_limit_bytes),
    )(c, G.astype(jnp.float32))

    output = out_dn.reshape(d, n).T                                    # (n, d)

    # Sigma = L @ L.T,  L = strict_lower(M) + diag(exp(diag(M)))   (SPDLogCholesky).
    # Tiny (d, d) op — kept in plain JAX so it is not recomputed per grid step.
    M = M.astype(jnp.float32)
    L = jnp.tril(M, -1) + jnp.diag(jnp.exp(jnp.diag(M)))
    Sigma = L @ L.T
    return output, Sigma


def build_rkhs_constants(x, gamma=1.0):
    """Plain-JAX equivalent of the module's __init__ precomputation (not hot path).

    Returns (K, grad_K2, G) where G = [K | grad_K2 flattened over (l, a)] is the
    lane-dense combined constant streamed by the kernel.
    """
    n, d = x.shape
    x = x.astype(jnp.float32)
    omega = jnp.ones((d, d), jnp.float32) - jnp.eye(d, dtype=jnp.float32)
    diff = x[:, None, :] - x[None, :, :]                          # (n, n, d)  [i, l, k]
    sq_dist = jnp.einsum('jk,ilk->jil', omega, diff ** 2)         # (d, n, n)
    K = jnp.exp(-sq_dist / gamma ** 2)                            # (d, n, n)
    grad_K1 = (-2.0 / gamma ** 2) * jnp.einsum('jil,ila->jila', K, diff)
    eye_mask = jnp.eye(d, dtype=bool)[:, None, None, :]           # (d, 1, 1, d)
    grad_K1 = jnp.where(eye_mask, 0.0, grad_K1)
    grad_K2 = -grad_K1                                            # (d, n, n, d)
    G = jnp.concatenate([K, grad_K2.reshape(d, n, n * d)], axis=-1)   # (d, n, n*(d+1))
    return K, grad_K2, G


def reverse_spd_log_cholesky(d, key):
    """Deterministic init for parameter M (matches reverse_SPDLogCholesky)."""
    cov = jax.random.uniform(key, (d, d), dtype=jnp.float32) * 0.1 - 0.05
    cov = jnp.triu(cov, k=1)
    sigma_init = cov + cov.T + jnp.eye(d, dtype=jnp.float32)
    L = jnp.linalg.cholesky(sigma_init)
    return jnp.tril(L, -1) + jnp.diag(jnp.log(jnp.diag(L)))


if __name__ == "__main__":
    n, d = 256, 4            # n observations, d variables
    gamma = 1.0
    key = jax.random.PRNGKey(0)
    kx, ka, kb, km = jax.random.split(key, 4)

    x = jax.random.normal(kx, (n, d), dtype=jnp.float32)
    # The module inits alpha/beta to zeros; use small deterministic values so the
    # kernel result is non-trivial.
    alpha = 0.1 * jax.random.normal(ka, (d, n), dtype=jnp.float32)
    beta = 0.1 * jax.random.normal(kb, (d, d, n), dtype=jnp.float32)
    M = reverse_spd_log_cholesky(d, km)

    K, grad_K2, G = build_rkhs_constants(x, gamma)

    # Explicit tile to exercise the (d, n/tile) grid; also run the auto-tiled path.
    out, sigma = admg_rkhs_forward(alpha, beta, G, M, tile_i=128)
    out_auto, sigma_auto = admg_rkhs_forward(alpha, beta, G, M)
    jax.block_until_ready((out, sigma, out_auto, sigma_auto))

    # float64 NumPy reference of the PyTorch forward().
    a64 = np.asarray(alpha, np.float64); b64 = np.asarray(beta, np.float64)
    K64 = np.asarray(K, np.float64); g64 = np.asarray(grad_K2, np.float64)
    out_ref = (np.einsum('jl,jil->ij', a64, K64)
               + np.einsum('jal,jila->ij', b64, g64))
    M64 = np.asarray(M, np.float64)
    L_ref = np.tril(M64, -1) + np.diag(np.exp(np.diag(M64)))
    sigma_ref = L_ref @ L_ref.T

    # Tolerance: kernel accumulates in f32 on the MXU vs float64 reference (the
    # PyTorch module itself mixes f64 data with f32 params).
    assert np.allclose(np.asarray(out), out_ref, rtol=2e-3, atol=2e-3), "output mismatch"
    assert np.allclose(np.asarray(out_auto), out_ref, rtol=2e-3, atol=2e-3), \
        "output mismatch (auto tile)"
    assert np.allclose(np.asarray(sigma), sigma_ref, rtol=1e-4, atol=1e-5), "Sigma mismatch"
    assert np.allclose(np.asarray(sigma_auto), sigma_ref, rtol=1e-4, atol=1e-5), \
        "Sigma mismatch (auto tile)"

    print("KERNEL_OK")
</pallas_src>

<mosaic_0001>
module attributes {stable_mosaic.version = 11 : i64} {
  func.func @_forward_kernel(%arg0: i32, %arg1: i32, %arg2: memref<1x1x1280xf32, #tpu.memory_space<vmem>>, %arg3: memref<1x128x1280xf32, #tpu.memory_space<vmem>>, %arg4: memref<1x1x128xf32, #tpu.memory_space<vmem>>) attributes {dimension_semantics = [#tpu.dimension_semantics<parallel>, #tpu.dimension_semantics<parallel>], iteration_bounds = array<i64: 4, 2>, scalar_prefetch = 0 : i64, scratch_operands = 0 : i64, tpu.core_type = #tpu.core_type<tc>, window_params = [{transform_indices = @transform_0, window_bounds = array<i64: 1, 1, 1280>}, {transform_indices = @transform_1, window_bounds = array<i64: 1, 128, 1280>}, {transform_indices = @transform_2, window_bounds = array<i64: 1, 1, 128>}]} {
    %c0 = arith.constant 0 : index
    %c0_0 = arith.constant 0 : index
    %c0_1 = arith.constant 0 : index
    %0 = vector.load %arg2[%c0, %c0_0, %c0_1] : memref<1x1x1280xf32, #tpu.memory_space<vmem>>, vector<1x1x1280xf32>
    %1 = vector.shape_cast %0 : vector<1x1x1280xf32> to vector<1x1280xf32>
    %c0_2 = arith.constant 0 : index
    %c0_3 = arith.constant 0 : index
    %c0_4 = arith.constant 0 : index
    %2 = vector.load %arg3[%c0_2, %c0_3, %c0_4] : memref<1x128x1280xf32, #tpu.memory_space<vmem>>, vector<1x128x1280xf32>
    %3 = vector.shape_cast %2 : vector<1x128x1280xf32> to vector<128x1280xf32>
    %cst = arith.constant dense<0.000000e+00> : vector<1x128xf32>
    %4 = tpu.matmul %1, %3, %cst {dimension_numbers = #tpu.dot_dimension_numbers<[1], [1], [0], [0], [0, 0, 1, 0], [], []>} : vector<1x1280xf32>, vector<128x1280xf32>, vector<1x128xf32> -> vector<1x128xf32>
    %c0_5 = arith.constant 0 : index
    %c0_6 = arith.constant 0 : index
    %c0_7 = arith.constant 0 : index
    %5 = vector.load %arg4[%c0_5, %c0_6, %c0_7] : memref<1x1x128xf32, #tpu.memory_space<vmem>>, vector<1x1x128xf32>
    %6 = vector.shape_cast %5 : vector<1x1x128xf32> to vector<1x128xf32>
    %7 = vector.shape_cast %4 : vector<1x128xf32> to vector<1x1x128xf32>
    tpu.vector_store %arg4[%c0_5, %c0_6, %c0_7], %7 {strides = array<i32>} : memref<1x1x128xf32, #tpu.memory_space<vmem>>, vector<1x1x128xf32>,
    return
  }
  func.func @transform_0(%arg0: i32, %arg1: i32) -> (i32, i32, i32) {
    %c0_i32 = arith.constant 0 : i32
    %c0_i32_0 = arith.constant 0 : i32
    %c0_i32_1 = arith.constant 0 : i32
    return %arg0, %c0_i32, %c0_i32_0 : i32, i32, i32
  }
  func.func @transform_1(%arg0: i32, %arg1: i32) -> (i32, i32, i32) {
    %c0_i32 = arith.constant 0 : i32
    %c0_i32_0 = arith.constant 0 : i32
    return %arg0, %arg1, %c0_i32 : i32, i32, i32
  }
  func.func @transform_2(%arg0: i32, %arg1: i32) -> (i32, i32, i32) {
    %c0_i32 = arith.constant 0 : i32
    %c0_i32_0 = arith.constant 0 : i32
    return %arg0, %c0_i32, %arg1 : i32, i32, i32
  }
}

</mosaic_0001>

<llo_original>
// kernel: tpu_custom_call.1
$region0: #{tpu_custom_call.1}
  #allocation0 [shape = 'u32[]', space=smem, size = 0x4, offset = 0x4, fixed_abs, tag = 'smem constant byte address 0x4 - core index']
  #allocation1 [shape = 'u32[144,128]{1,0:T(1,128)}', space=vmem, size = 0x12000, scoped, tag = 'internal scratch']
  %s0 = inlined_call_operand.hbm [shape: f32[4,1,1280], index: 0, kind: input, shape index: {}]
  %s1 = inlined_call_operand.hbm [shape: f32[4,256,1280], index: 1, kind: input, shape index: {}]
  %s2 = inlined_call_operand.hbm [shape: f32[4,1,256], index: 2, kind: output, shape index: {}]
  %s3 = sld [smem:[#allocation0]]
  $region49: #{tpu_custom_call.1} parent=0
    _
  %s5 = ssub.s32 1, %s3
  %s6 = scalar_select 0, %s5, %s3
  $region1: #{tpu_custom_call.1} parent=0
    #allocation2 [shape = 'u8[10240]{0}', space=vmem, size = 0x2800, scoped, tag = 'input window, operand 0']
    #allocation3 [shape = 's32[2]{0}', space=sflag, size = 0x8, scoped, tag = 'scoped memory for tpu_custom_call.1']
    #allocation4 [shape = 's32[2]{0}', space=sflag, size = 0x8, scoped, tag = 'scoped memory for tpu_custom_call.1']
    #allocation5 [shape = 'u8[1310720]{0}', space=vmem, size = 0x140000, scoped, tag = 'input window, operand 1']
    #allocation6 [shape = 's32[2]{0}', space=sflag, size = 0x8, scoped, tag = 'scoped memory for tpu_custom_call.1']
    #allocation7 [shape = 'u8[1024]{0}', space=vmem, size = 0x400, scoped, tag = 'output window, operand 0']
    %7 = vsyncpa [#allocation3], 0
    %s8 = scalar_lea.sflag [#allocation3], 1
    %9 = vsyncpa %s8, 0
    %10 = vsyncpa [#allocation6], 0
    %s11 = scalar_lea.sflag [#allocation6], 1
    %12 = vsyncpa %s11, 0
    %13 = vsyncpa [#allocation4], 0
    %s14 = scalar_lea.sflag [#allocation4], 1
    %15 = vsyncpa %s14, 0
    loop: start=0, step=1, limit=10
    $region2: #{tpu_custom_call.1} parent=1 // loop_pre_header
      _
    $region3: #{tpu_custom_call.1} parent=1 // loop_header
      %s17 = sphi 0, %s21
      %p18 = scmp.ge.s32.totalorder %s17, 10
      %s24 = sphi 0, %s36
      %s25 = sphi 0, %s32
      %s26 = sphi 0, %s24
      %s27 = sphi 0, %s25
      %s28 = sphi 0, %s26
      %s29 = sphi 0, %s27
      %s39 = sphi 0, %s41
      %s42 = sphi 0, %s39
      %s43 = sphi 0, %s42
      %s59 = sphi 0, %s43
      %s67 = sphi 0, %s69
      %s70 = sphi 0, %s67
      %s71 = sphi 0, %s70
      %s87 = sphi 0, %s71
      %s95 = sphi 0, %s97
      %s98 = sphi 0, %s95
      %s99 = sphi 0, %s98
      %s115 = sphi 0, %s99
    $region4: #{tpu_custom_call.1} parent=1 // loop_header_branch
      %20 = sbr.rel (%p18) target = $region8
    $region5: #{tpu_custom_call.1} parent=1 // loop_body
      %s22 = ssub.s32 %s17, 1
      %s23 = ssub.s32 %s17, 2
      %s30 = sadd.s32 1, %s25
      %p31 = scmp.ge.s32.totalorder %s30, 2
      %s32 = scalar_select %p31, 0, %s30
      %s33 = sadd.s32 1, %s24
      %s34 = scalar_select %p31, %s33, %s24
      %p35 = scmp.ge.s32.totalorder %s34, 4
      %s36 = scalar_select %p35, 0, %s34
      %s37 = ssub.s32 %s24, %s36
      %p38 = scmp.eq.s32.totalorder %s37, 0
      %s40 = sadd.s32 %s39, 1
      %s41 = scalar_select %p38, %s39, %s40
      %p44 = pneg %p38
      %p45 = scmp.eq.s32.totalorder %s17, 7
      %p46 = por %p44, %p45
      %p47 = scmp.ne.s32.totalorder %s39, %s42
      %p48 = scmp.eq.s32.totalorder %s17, 0
      %p49 = por %p47, %p48
      %p50 = scmp.ne.s32.totalorder %s39, %s42
      %p51 = scmp.eq.s32.totalorder %s22, 7
      %p52 = por %p50, %p51
      %p53 = scmp.ne.s32.totalorder %s42, %s43
      %p54 = scmp.eq.s32.totalorder %s22, 0
      %p55 = por %p53, %p54
      %p56 = scmp.ne.s32.totalorder %s42, %s43
      %p57 = scmp.eq.s32.totalorder %s23, 7
      %p58 = por %p56, %p57
      %p60 = scmp.ne.s32.totalorder %s43, %s59
      %p61 = scmp.eq.s32.totalorder %s23, 0
      %p62 = por %p60, %p61
      %s63 = ssub.s32 %s24, %s36
      %s64 = ssub.s32 %s25, %s32
      %s65 = sor.u32 %s63, %s64
      %p66 = scmp.eq.s32.totalorder %s65, 0
      %s68 = sadd.s32 %s67, 1
      %s69 = scalar_select %p66, %s67, %s68
      %p72 = pneg %p66
      %p73 = scmp.eq.s32.totalorder %s17, 7
      %p74 = por %p72, %p73
      %p75 = scmp.ne.s32.totalorder %s67, %s70
      %p76 = scmp.eq.s32.totalorder %s17, 0
      %p77 = por %p75, %p76
      %p78 = scmp.ne.s32.totalorder %s67, %s70
      %p79 = scmp.eq.s32.totalorder %s22, 7
      %p80 = por %p78, %p79
      %p81 = scmp.ne.s32.totalorder %s70, %s71
      %p82 = scmp.eq.s32.totalorder %s22, 0
      %p83 = por %p81, %p82
      %p84 = scmp.ne.s32.totalorder %s70, %s71
      %p85 = scmp.eq.s32.totalorder %s23, 7
      %p86 = por %p84, %p85
      %p88 = scmp.ne.s32.totalorder %s71, %s87
      %p89 = scmp.eq.s32.totalorder %s23, 0
      %p90 = por %p88, %p89
      %s91 = ssub.s32 %s24, %s36
      %s92 = ssub.s32 %s25, %s32
      %s93 = sor.u32 %s91, %s92
      %p94 = scmp.eq.s32.totalorder %s93, 0
      %s96 = sadd.s32 %s95, 1
      %s97 = scalar_select %p94, %s95, %s96
      %p100 = pneg %p94
      %p101 = scmp.eq.s32.totalorder %s17, 7
      %p102 = por %p100, %p101
      %p103 = scmp.ne.s32.totalorder %s95, %s98
      %p104 = scmp.eq.s32.totalorder %s17, 0
      %p105 = por %p103, %p104
      %p106 = scmp.ne.s32.totalorder %s95, %s98
      %p107 = scmp.eq.s32.totalorder %s22, 7
      %p108 = por %p106, %p107
      %p109 = scmp.ne.s32.totalorder %s98, %s99
      %p110 = scmp.eq.s32.totalorder %s22, 0
      %p111 = por %p109, %p110
      %p112 = scmp.ne.s32.totalorder %s98, %s99
      %p113 = scmp.eq.s32.totalorder %s23, 7
      %p114 = por %p112, %p113
      %p116 = scmp.ne.s32.totalorder %s99, %s115
      %p117 = scmp.eq.s32.totalorder %s23, 0
      %p118 = por %p116, %p117
      %p119 = scmp.le.s32.totalorder 1, %s17
      %p120 = scmp.lt.s32.totalorder %s17, 9
      %p121 = pnand %p119, %p120
      %p122 = pneg %p121
      // Predicated region
      $region9: #{tpu_custom_call.1} parent=5 // pred_check
        _
      $region10: #{tpu_custom_call.1} parent=5 // pred_check_branch
        %124 = sbr.rel (%p121) target = $region12
      $region11: #{tpu_custom_call.1} parent=5 // pred_region
        %s125 = ssub.s32 %s17, 1
      $region12: #{tpu_custom_call.1} parent=5 // pred_fallthru
        _
      %p126 = scmp.lt.s32.totalorder %s17, 8
      // Predicated region
      $region13: #{tpu_custom_call.1} parent=5 // pred_check
        %p127 = pneg %p126
      $region14: #{tpu_custom_call.1} parent=5 // pred_check_branch
        %129 = sbr.rel (%p127) target = $region16
      $region15: #{tpu_custom_call.1} parent=5 // pred_region
        // Predicated region
        $region17: #{tpu_custom_call.1} parent=15 // pred_check
          %p130 = pneg %p49
        $region18: #{tpu_custom_call.1} parent=15 // pred_check_branch
          %132 = sbr.rel (%p130) target = $region20
        $region19: #{tpu_custom_call.1} parent=15 // pred_region
          %s133 = sand.u32 %s39, 1
          %s134 = scalar_lea.sflag [#allocation3], %s133
          %s135 = sand.u32 %s39, 1
          %s136 = smul.addr %s135, 10
          %s137 = scalar_lea.vmem [#allocation2], %s136
          %s139 = ssub.s32 160, 160
          %140 = vsyncadd %s134, %s139
          %s141 = smul.addr %s24, 10
          %s142 = smul.addr %s141, 16
          %s143 = scalar_lea.hbm %s0, %s142
          %s145 = sshll.u32 %s137, 4
          %s146 = int_to_ptr.vmem [resolvable:$true] %s145
          %148 = dma.hbm_to_vmem [thread:$0]  %s143, 160, %s146, %s134
        $region20: #{tpu_custom_call.1} parent=15 // pred_fallthru
          _
        // Predicated region
        $region21: #{tpu_custom_call.1} parent=15 // pred_check
          %p149 = pneg %p77
        $region22: #{tpu_custom_call.1} parent=15 // pred_check_branch
          %151 = sbr.rel (%p149) target = $region24
        $region23: #{tpu_custom_call.1} parent=15 // pred_region
          %s152 = sand.u32 %s67, 1
          %s153 = scalar_lea.sflag [#allocation6], %s152
          %s154 = sand.u32 %s67, 1
          %s155 = smul.addr %s154, 1280
          %s156 = scalar_lea.vmem [#allocation5], %s155
          %s157 = smul.u32 16, %s25
          %s159 = ssub.s32 20480, 20480
          %160 = vsyncadd %s153, %s159
          %s161 = smul.addr %s157, 10
          %s162 = smul.addr %s24, 320
          %s163 = sadd.s32 %s161, %s162
          %s164 = smul.addr %s163, 128
          %s165 = scalar_lea.hbm %s1, %s164
          %s166 = sshll.u32 %s156, 4
          %s167 = int_to_ptr.vmem [resolvable:$true] %s166
          %172 = dma.hbm_to_vmem [thread:$0]  %s165, 20480, %s167, %s153, 1280, 1280, 80
        $region24: #{tpu_custom_call.1} parent=15 // pred_fallthru
          _
      $region16: #{tpu_custom_call.1} parent=5 // pred_fallthru
        _
      %p173 = scmp.le.s32.totalorder 1, %s17
      %p174 = scmp.lt.s32.totalorder %s17, 9
      %p175 = pnand %p173, %p174
      %p176 = pneg %p175
      // Predicated region
      $region25: #{tpu_custom_call.1} parent=5 // pred_check
        _
      $region26: #{tpu_custom_call.1} parent=5 // pred_check_branch
        %178 = sbr.rel (%p175) target = $region28
      $region27: #{tpu_custom_call.1} parent=5 // pred_region
        %s179 = ssub.s32 %s17, 1
        %s180 = sand.u32 %s42, 1
        %s181 = scalar_lea.sflag [#allocation3], %s180
        %s182 = sand.u32 %s42, 1
        %s183 = smul.addr %s182, 10
        %s184 = scalar_lea.vmem [#allocation2], %s183
        // Predicated region
        $region29: #{tpu_custom_call.1} parent=27 // pred_check
          %p185 = pneg %p55
        $region30: #{tpu_custom_call.1} parent=27 // pred_check_branch
          %187 = sbr.rel (%p185) target = $region32
        $region31: #{tpu_custom_call.1} parent=27 // pred_region
          %188 = dma.done %s181, 160
        $region32: #{tpu_custom_call.1} parent=27 // pred_fallthru
          _
        %s189 = sand.u32 %s70, 1
        %s190 = scalar_lea.sflag [#allocation6], %s189
        %s191 = sand.u32 %s70, 1
        %s192 = smul.addr %s191, 1280
        %s193 = scalar_lea.vmem [#allocation5], %s192
        // Predicated region
        $region33: #{tpu_custom_call.1} parent=27 // pred_check
          %p194 = pneg %p83
        $region34: #{tpu_custom_call.1} parent=27 // pred_check_branch
          %196 = sbr.rel (%p194) target = $region36
        $region35: #{tpu_custom_call.1} parent=27 // pred_region
          %197 = dma.done %s190, 20480
        $region36: #{tpu_custom_call.1} parent=27 // pred_fallthru
          _
        %s198 = sand.u32 %s42, 1
        %s199 = scalar_lea.sflag [#allocation3], %s198
        %s200 = sand.u32 %s42, 1
        %s201 = smul.addr %s200, 10
        %s202 = scalar_lea.vmem [#allocation2], %s201
        %p203 = pneg %p55
        %p204 = pneg %p52
        %s205 = sand.u32 %s70, 1
        %s206 = scalar_lea.sflag [#allocation6], %s205
        %s207 = sand.u32 %s70, 1
        %s208 = smul.addr %s207, 1280
        %s209 = scalar_lea.vmem [#allocation5], %s208
        %p210 = pneg %p83
        %p211 = pneg %p80
        %p212 = pneg %p111
        %p213 = pneg %p108
        %s214 = sand.u32 %s98, 1
        %s215 = scalar_lea.sflag [#allocation4], %s214
        %s216 = sand.u32 %s98, 1
        %s217 = scalar_lea.vmem [#allocation7], %s216
        %s218 = smul.u32 16, %s27
        %v219 = vld [vmem:[%s184] sm:$0xff]
        %v220 = vld [vmem:[%s184 + $0x8] sm:$0x3]
        %v221 = vld [vmem:[%s193] sm:$0xff]
        %v222 = vld [vmem:[%s193 + $0x8] sm:$0xff]
        %v223 = vld [vmem:[%s193 + $0x10] sm:$0xff]
        %v224 = vld [vmem:[%s193 + $0x18] sm:$0xff]
        %v225 = vld [vmem:[%s193 + $0x20] sm:$0xff]
        %v226 = vld [vmem:[%s193 + $0x28] sm:$0xff]
        %v227 = vld [vmem:[%s193 + $0x30] sm:$0xff]
        %v228 = vld [vmem:[%s193 + $0x38] sm:$0xff]
        %v229 = vld [vmem:[%s193 + $0x40] sm:$0xff]
        %v230 = vld [vmem:[%s193 + $0x48] sm:$0xff]
        %v231 = vld [vmem:[%s193 + $0x50] sm:$0xff]
        %v232 = vld [vmem:[%s193 + $0x58] sm:$0xff]
        %v233 = vld [vmem:[%s193 + $0x60] sm:$0xff]
        %v234 = vld [vmem:[%s193 + $0x68] sm:$0xff]
        %v235 = vld [vmem:[%s193 + $0x70] sm:$0xff]
        %v236 = vld [vmem:[%s193 + $0x78] sm:$0xff]
        %v237 = vld [vmem:[%s193 + $0x80] sm:$0xff]
        %v238 = vld [vmem:[%s193 + $0x88] sm:$0xff]
        %v239 = vld [vmem:[%s193 + $0x90] sm:$0xff]
        %v240 = vld [vmem:[%s193 + $0x98] sm:$0xff]
        %v241 = vld [vmem:[%s193 + $0xa0] sm:$0xff]
        %v242 = vld [vmem:[%s193 + $0xa8] sm:$0xff]
        %v243 = vld [vmem:[%s193 + $0xb0] sm:$0xff]
        %v244 = vld [vmem:[%s193 + $0xb8] sm:$0xff]
        %v245 = vld [vmem:[%s193 + $0xc0] sm:$0xff]
        %v246 = vld [vmem:[%s193 + $0xc8] sm:$0xff]
        %v247 = vld [vmem:[%s193 + $0xd0] sm:$0xff]
        %v248 = vld [vmem:[%s193 + $0xd8] sm:$0xff]
        %v249 = vld [vmem:[%s193 + $0xe0] sm:$0xff]
        %v250 = vld [vmem:[%s193 + $0xe8] sm:$0xff]
        %v251 = vld [vmem:[%s193 + $0xf0] sm:$0xff]
        %v252 = vld [vmem:[%s193 + $0xf8] sm:$0xff]
        %v253 = vld [vmem:[%s193 + $0x100] sm:$0xff]
        %v254 = vld [vmem:[%s193 + $0x108] sm:$0xff]
        %v255 = vld [vmem:[%s193 + $0x110] sm:$0xff]
        %v256 = vld [vmem:[%s193 + $0x118] sm:$0xff]
        %v257 = vld [vmem:[%s193 + $0x120] sm:$0xff]
        %v258 = vld [vmem:[%s193 + $0x128] sm:$0xff]
        %v259 = vld [vmem:[%s193 + $0x130] sm:$0xff]
        %v260 = vld [vmem:[%s193 + $0x138] sm:$0xff]
        %v261 = vld [vmem:[%s193 + $0x140] sm:$0xff]
        %v262 = vld [vmem:[%s193 + $0x148] sm:$0xff]
        %v263 = vld [vmem:[%s193 + $0x150] sm:$0xff]
        %v264 = vld [vmem:[%s193 + $0x158] sm:$0xff]
        %v265 = vld [vmem:[%s193 + $0x160] sm:$0xff]
        %v266 = vld [vmem:[%s193 + $0x168] sm:$0xff]
        %v267 = vld [vmem:[%s193 + $0x170] sm:$0xff]
        %v268 = vld [vmem:[%s193 + $0x178] sm:$0xff]
        %v269 = vld [vmem:[%s193 + $0x180] sm:$0xff]
        %v270 = vld [vmem:[%s193 + $0x188] sm:$0xff]
        %v271 = vld [vmem:[%s193 + $0x190] sm:$0xff]
        %v272 = vld [vmem:[%s193 + $0x198] sm:$0xff]
        %v273 = vld [vmem:[%s193 + $0x1a0] sm:$0xff]
        %v274 = vld [vmem:[%s193 + $0x1a8] sm:$0xff]
        %v275 = vld [vmem:[%s193 + $0x1b0] sm:$0xff]
        %v276 = vld [vmem:[%s193 + $0x1b8] sm:$0xff]
        %v277 = vld [vmem:[%s193 + $0x1c0] sm:$0xff]
        %v278 = vld [vmem:[%s193 + $0x1c8] sm:$0xff]
        %v279 = vld [vmem:[%s193 + $0x1d0] sm:$0xff]
        %v280 = vld [vmem:[%s193 + $0x1d8] sm:$0xff]
        %v281 = vld [vmem:[%s193 + $0x1e0] sm:$0xff]
        %v282 = vld [vmem:[%s193 + $0x1e8] sm:$0xff]
        %v283 = vld [vmem:[%s193 + $0x1f0] sm:$0xff]
        %v284 = vld [vmem:[%s193 + $0x1f8] sm:$0xff]
        %v285 = vld [vmem:[%s193 + $0x200] sm:$0xff]
        %v286 = vld [vmem:[%s193 + $0x208] sm:$0xff]
        %v287 = vld [vmem:[%s193 + $0x210] sm:$0xff]
        %v288 = vld [vmem:[%s193 + $0x218] sm:$0xff]
        %v289 = vld [vmem:[%s193 + $0x220] sm:$0xff]
        %v290 = vld [vmem:[%s193 + $0x228] sm:$0xff]
        %v291 = vld [vmem:[%s193 + $0x230] sm:$0xff]
        %v292 = vld [vmem:[%s193 + $0x238] sm:$0xff]
        %v293 = vld [vmem:[%s193 + $0x240] sm:$0xff]
        %v294 = vld [vmem:[%s193 + $0x248] sm:$0xff]
        %v295 = vld [vmem:[%s193 + $0x250] sm:$0xff]
        %v296 = vld [vmem:[%s193 + $0x258] sm:$0xff]
        %v297 = vld [vmem:[%s193 + $0x260] sm:$0xff]
        %v298 = vld [vmem:[%s193 + $0x268] sm:$0xff]
        %v299 = vld [vmem:[%s193 + $0x270] sm:$0xff]
        %v300 = vld [vmem:[%s193 + $0x278] sm:$0xff]
        %v301 = vld [vmem:[%s193 + $0x280] sm:$0xff]
        %v302 = vld [vmem:[%s193 + $0x288] sm:$0xff]
        %v303 = vld [vmem:[%s193 + $0x290] sm:$0xff]
        %v304 = vld [vmem:[%s193 + $0x298] sm:$0xff]
        %v305 = vld [vmem:[%s193 + $0x2a0] sm:$0xff]
        %v306 = vld [vmem:[%s193 + $0x2a8] sm:$0xff]
        %v307 = vld [vmem:[%s193 + $0x2b0] sm:$0xff]
        %v308 = vld [vmem:[%s193 + $0x2b8] sm:$0xff]
        %v309 = vld [vmem:[%s193 + $0x2c0] sm:$0xff]
        %v310 = vld [vmem:[%s193 + $0x2c8] sm:$0xff]
        %v311 = vld [vmem:[%s193 + $0x2d0] sm:$0xff]
        %v312 = vld [vmem:[%s193 + $0x2d8] sm:$0xff]
        %v313 = vld [vmem:[%s193 + $0x2e0] sm:$0xff]
        %v314 = vld [vmem:[%s193 + $0x2e8] sm:$0xff]
        %v315 = vld [vmem:[%s193 + $0x2f0] sm:$0xff]
        %v316 = vld [vmem:[%s193 + $0x2f8] sm:$0xff]
        %v317 = vld [vmem:[%s193 + $0x300] sm:$0xff]
        %v318 = vld [vmem:[%s193 + $0x308] sm:$0xff]
        %v319 = vld [vmem:[%s193 + $0x310] sm:$0xff]
        %v320 = vld [vmem:[%s193 + $0x318] sm:$0xff]
        %v321 = vld [vmem:[%s193 + $0x320] sm:$0xff]
        %v322 = vld [vmem:[%s193 + $0x328] sm:$0xff]
        %v323 = vld [vmem:[%s193 + $0x330] sm:$0xff]
        %v324 = vld [vmem:[%s193 + $0x338] sm:$0xff]
        %v325 = vld [vmem:[%s193 + $0x340] sm:$0xff]
        %v326 = vld [vmem:[%s193 + $0x348] sm:$0xff]
        %v327 = vld [vmem:[%s193 + $0x350] sm:$0xff]
        %v328 = vld [vmem:[%s193 + $0x358] sm:$0xff]
        %v329 = vld [vmem:[%s193 + $0x360] sm:$0xff]
        %v330 = vld [vmem:[%s193 + $0x368] sm:$0xff]
        %v331 = vld [vmem:[%s193 + $0x370] sm:$0xff]
        %v332 = vld [vmem:[%s193 + $0x378] sm:$0xff]
        %v333 = vld [vmem:[%s193 + $0x380] sm:$0xff]
        %v334 = vld [vmem:[%s193 + $0x388] sm:$0xff]
        %v335 = vld [vmem:[%s193 + $0x390] sm:$0xff]
        %v336 = vld [vmem:[%s193 + $0x398] sm:$0xff]
        %v337 = vld [vmem:[%s193 + $0x3a0] sm:$0xff]
        %v338 = vld [vmem:[%s193 + $0x3a8] sm:$0xff]
        %v339 = vld [vmem:[%s193 + $0x3b0] sm:$0xff]
        %v340 = vld [vmem:[%s193 + $0x3b8] sm:$0xff]
        %v341 = vld [vmem:[%s193 + $0x3c0] sm:$0xff]
        %v342 = vld [vmem:[%s193 + $0x3c8] sm:$0xff]
        %v343 = vld [vmem:[%s193 + $0x3d0] sm:$0xff]
        %v344 = vld [vmem:[%s193 + $0x3d8] sm:$0xff]
        %v345 = vld [vmem:[%s193 + $0x3e0] sm:$0xff]
        %v346 = vld [vmem:[%s193 + $0x3e8] sm:$0xff]
        %v347 = vld [vmem:[%s193 + $0x3f0] sm:$0xff]
        %v348 = vld [vmem:[%s193 + $0x3f8] sm:$0xff]
        %v349 = vld [vmem:[%s193 + $0x400] sm:$0xff]
        %v350 = vld [vmem:[%s193 + $0x408] sm:$0xff]
        %v351 = vld [vmem:[%s193 + $0x410] sm:$0xff]
        %v352 = vld [vmem:[%s193 + $0x418] sm:$0xff]
        %v353 = vld [vmem:[%s193 + $0x420] sm:$0xff]
        %v354 = vld [vmem:[%s193 + $0x428] sm:$0xff]
        %v355 = vld [vmem:[%s193 + $0x430] sm:$0xff]
        %v356 = vld [vmem:[%s193 + $0x438] sm:$0xff]
        %v357 = vld [vmem:[%s193 + $0x440] sm:$0xff]
        %v358 = vld [vmem:[%s193 + $0x448] sm:$0xff]
        %v359 = vld [vmem:[%s193 + $0x450] sm:$0xff]
        %v360 = vld [vmem:[%s193 + $0x458] sm:$0xff]
        %v361 = vld [vmem:[%s193 + $0x460] sm:$0xff]
        %v362 = vld [vmem:[%s193 + $0x468] sm:$0xff]
        %v363 = vld [vmem:[%s193 + $0x470] sm:$0xff]
        %v364 = vld [vmem:[%s193 + $0x478] sm:$0xff]
        %v365 = vld [vmem:[%s193 + $0x480] sm:$0xff]
        %v366 = vld [vmem:[%s193 + $0x488] sm:$0xff]
        %v367 = vld [vmem:[%s193 + $0x490] sm:$0xff]
        %v368 = vld [vmem:[%s193 + $0x498] sm:$0xff]
        %v369 = vld [vmem:[%s193 + $0x4a0] sm:$0xff]
        %v370 = vld [vmem:[%s193 + $0x4a8] sm:$0xff]
        %v371 = vld [vmem:[%s193 + $0x4b0] sm:$0xff]
        %v372 = vld [vmem:[%s193 + $0x4b8] sm:$0xff]
        %v373 = vld [vmem:[%s193 + $0x4c0] sm:$0xff]
        %v374 = vld [vmem:[%s193 + $0x4c8] sm:$0xff]
        %v375 = vld [vmem:[%s193 + $0x4d0] sm:$0xff]
        %v376 = vld [vmem:[%s193 + $0x4d8] sm:$0xff]
        %v377 = vld [vmem:[%s193 + $0x4e0] sm:$0xff]
        %v378 = vld [vmem:[%s193 + $0x4e8] sm:$0xff]
        %v379 = vld [vmem:[%s193 + $0x4f0] sm:$0xff]
        %v380 = vld [vmem:[%s193 + $0x4f8] sm:$0xff]
        %v383 = vlaneseq
        %v384 = vshrl.u32 %v383, 7
        %v385 = vsub.s32 0, %v384
        %v386 = vrot.slane %v219, %v385
        %v387 = vlaneseq
        %v388 = vshrl.u32 %v387, 7
        %v389 = vsub.s32 1, %v388
        %v390 = vrot.slane %v219, %v389
        %v391 = vlaneseq
        %v392 = vshrl.u32 %v391, 7
        %v393 = vsub.s32 2, %v392
        %v394 = vrot.slane %v219, %v393
        %v395 = vlaneseq
        %v396 = vshrl.u32 %v395, 7
        %v397 = vsub.s32 3, %v396
        %v398 = vrot.slane %v219, %v397
        %v399 = vlaneseq
        %v400 = vshrl.u32 %v399, 7
        %v401 = vsub.s32 4, %v400
        %v402 = vrot.slane %v219, %v401
        %v403 = vlaneseq
        %v404 = vshrl.u32 %v403, 7
        %v405 = vsub.s32 5, %v404
        %v406 = vrot.slane %v219, %v405
        %v407 = vlaneseq
        %v408 = vshrl.u32 %v407, 7
        %v409 = vsub.s32 6, %v408
        %v410 = vrot.slane %v219, %v409
        %v411 = vlaneseq
        %v412 = vshrl.u32 %v411, 7
        %v413 = vsub.s32 7, %v412
        %v414 = vrot.slane %v219, %v413
        %v415 = vlaneseq
        %v416 = vshrl.u32 %v415, 7
        %v417 = vsub.s32 0, %v416
        %v418 = vrot.slane %v220, %v417
        %v419 = vlaneseq
        %v420 = vshrl.u32 %v419, 7
        %v421 = vsub.s32 1, %v420
        %v422 = vrot.slane %v220, %v421
        %433 = vmatprep.subr.mxu0 %v222
        %434 = vmatpush1.xpose.msra.mxu0 %v221
        %435 = vmatprep.subr.mxu0 %v232
        %436 = vmatpush1.xpose.msra.mxu0 %v231
        %437 = vmatprep.subr.mxu0 %v242
        %438 = vmatpush1.xpose.msra.mxu0 %v241
        %439 = vmatprep.subr.mxu0 %v252
        %440 = vmatpush1.xpose.msra.mxu0 %v251
        %441 = vmatprep.subr.mxu0 %v262
        %442 = vmatpush1.xpose.msra.mxu0 %v261
        %443 = vmatprep.subr.mxu0 %v272
        %444 = vmatpush1.xpose.msra.mxu0 %v271
        %445 = vmatprep.subr.mxu0 %v282
        %446 = vmatpush1.xpose.msra.mxu0 %v281
        %447 = vmatprep.subr.mxu0 %v292
        %448 = vmatpush1.xpose.msra.mxu0 %v291
        %449 = vmatprep.subr.mxu0 %v302
        %450 = vmatpush1.xpose.msra.mxu0 %v301
        %451 = vmatprep.subr.mxu0 %v312
        %452 = vmatpush1.xpose.msra.mxu0 %v311
        %453 = vmatprep.subr.mxu0 %v322
        %454 = vmatpush1.xpose.msra.mxu0 %v321
        %455 = vmatprep.subr.mxu0 %v332
        %456 = vmatpush1.xpose.msra.mxu0 %v331
        %457 = vmatprep.subr.mxu0 %v342
        %458 = vmatpush1.xpose.msra.mxu0 %v341
        %459 = vmatprep.subr.mxu0 %v352
        %460 = vmatpush1.xpose.msra.mxu0 %v351
        %461 = vmatprep.subr.mxu0 %v362
        %462 = vmatpush1.xpose.msra.mxu0 %v361
        %463 = vmatprep.subr.mxu0 %v372
        %464 = vmatpush1.xpose.msra.mxu0 %v371
        %465 = vmatprep.subr.mxu0 0.0
        %466 = vmatpush1.xpose.msra.mxu0 0.0
        %467 = vmatprep.subr.mxu0 0.0
        %468 = vmatpush1.xpose.msra.mxu0 0.0
        %469 = vmatprep.subr.mxu0 0.0
        %470 = vmatpush1.xpose.msra.mxu0 0.0
        %471 = vmatprep.subr.mxu0 0.0
        %472 = vmatpush1.xpose.msra.mxu0 0.0
        %473 = vmatprep.subr.mxu0 0.0
        %474 = vmatpush1.xpose.msra.mxu0 0.0
        %475 = vmatprep.subr.mxu0 0.0
        %476 = vmatpush1.xpose.msra.mxu0 0.0
        %477 = vmatprep.subr.mxu0 0.0
        %478 = vmatpush1.xpose.msra.mxu0 0.0
        %479 = vmatprep.subr.mxu0 0.0
        %480 = vmatpush1.xpose.msra.mxu0 0.0
        %481 = vmatprep.subr.mxu0 0.0
        %482 = vmatpush1.xpose.msra.mxu0 0.0
        %483 = vmatprep.subr.mxu0 0.0
        %484 = vmatpush1.xpose.msra.mxu0 0.0
        %485 = vmatprep.subr.mxu0 0.0
        %486 = vmatpush1.xpose.msra.mxu0 0.0
        %487 = vmatprep.subr.mxu0 0.0
        %488 = vmatpush1.xpose.msra.mxu0 0.0
        %489 = vmatprep.subr.mxu0 0.0
        %490 = vmatpush1.xpose.msra.mxu0 0.0
        %491 = vmatprep.subr.mxu0 0.0
        %492 = vmatpush1.xpose.msra.mxu0 0.0
        %493 = vmatprep.subr.mxu0 0.0
        %494 = vmatpush1.xpose.msra.mxu0 0.0
        %495 = vmatprep.subr.mxu0 0.0
        %496 = vmatpush1.xpose.msra.mxu0 0.0
        %497 = vmatprep.mubr.f32.mxu0 %v390
        %498 = vmatmul.mubr.f32.gmra.mrb[0].mxu0 %v386
        %v499 = vpop.f32.mrb[0].mxu0
        %v500 = vadd.f32 0.0, %v499
        %v501 = vpop.f32.mrb[0].mxu0
        %502 = vdwg.mxu0
        %503 = vmatprep.subr.mxu0 %v224
        %504 = vmatpush1.xpose.msra.mxu0 %v223
        %505 = vmatprep.subr.mxu0 %v234
        %506 = vmatpush1.xpose.msra.mxu0 %v233
        %507 = vmatprep.subr.mxu0 %v244
        %508 = vmatpush1.xpose.msra.mxu0 %v243
        %509 = vmatprep.subr.mxu0 %v254
        %510 = vmatpush1.xpose.msra.mxu0 %v253
        %511 = vmatprep.subr.mxu0 %v264
        %512 = vmatpush1.xpose.msra.mxu0 %v263
        %513 = vmatprep.subr.mxu0 %v274
        %514 = vmatpush1.xpose.msra.mxu0 %v273
        %515 = vmatprep.subr.mxu0 %v284
        %516 = vmatpush1.xpose.msra.mxu0 %v283
        %517 = vmatprep.subr.mxu0 %v294
        %518 = vmatpush1.xpose.msra.mxu0 %v293
        %519 = vmatprep.subr.mxu0 %v304
        %520 = vmatpush1.xpose.msra.mxu0 %v303
        %521 = vmatprep.subr.mxu0 %v314
        %522 = vmatpush1.xpose.msra.mxu0 %v313
        %523 = vmatprep.subr.mxu0 %v324
        %524 = vmatpush1.xpose.msra.mxu0 %v323
        %525 = vmatprep.subr.mxu0 %v334
        %526 = vmatpush1.xpose.msra.mxu0 %v333
        %527 = vmatprep.subr.mxu0 %v344
        %528 = vmatpush1.xpose.msra.mxu0 %v343
        %529 = vmatprep.subr.mxu0 %v354
        %530 = vmatpush1.xpose.msra.mxu0 %v353
        %531 = vmatprep.subr.mxu0 %v364
        %532 = vmatpush1.xpose.msra.mxu0 %v363
        %533 = vmatprep.subr.mxu0 %v374
        %534 = vmatpush1.xpose.msra.mxu0 %v373
        %535 = vmatprep.subr.mxu0 0.0
        %536 = vmatpush1.xpose.msra.mxu0 0.0
        %537 = vmatprep.subr.mxu0 0.0
        %538 = vmatpush1.xpose.msra.mxu0 0.0
        %539 = vmatprep.subr.mxu0 0.0
        %540 = vmatpush1.xpose.msra.mxu0 0.0
        %541 = vmatprep.subr.mxu0 0.0
        %542 = vmatpush1.xpose.msra.mxu0 0.0
        %543 = vmatprep.subr.mxu0 0.0
        %544 = vmatpush1.xpose.msra.mxu0 0.0
        %545 = vmatprep.subr.mxu0 0.0
        %546 = vmatpush1.xpose.msra.mxu0 0.0
        %547 = vmatprep.subr.mxu0 0.0
        %548 = vmatpush1.xpose.msra.mxu0 0.0
        %549 = vmatprep.subr.mxu0 0.0
        %550 = vmatpush1.xpose.msra.mxu0 0.0
        %551 = vmatprep.subr.mxu0 0.0
        %552 = vmatpush1.xpose.msra.mxu0 0.0
        %553 = vmatprep.subr.mxu0 0.0
        %554 = vmatpush1.xpose.msra.mxu0 0.0
        %555 = vmatprep.subr.mxu0 0.0
        %556 = vmatpush1.xpose.msra.mxu0 0.0
        %557 = vmatprep.subr.mxu0 0.0
        %558 = vmatpush1.xpose.msra.mxu0 0.0
        %559 = vmatprep.subr.mxu0 0.0
        %560 = vmatpush1.xpose.msra.mxu0 0.0
        %561 = vmatprep.subr.mxu0 0.0
        %562 = vmatpush1.xpose.msra.mxu0 0.0
        %563 = vmatprep.subr.mxu0 0.0
        %564 = vmatpush1.xpose.msra.mxu0 0.0
        %565 = vmatprep.subr.mxu0 0.0
        %566 = vmatpush1.xpose.msra.mxu0 0.0
        %567 = vmatprep.mubr.f32.mxu0 %v398
        %568 = vmatmul.mubr.f32.gmra.mrb[0].mxu0 %v394
        %v569 = vpop.f32.mrb[0].mxu0
        %v570 = vadd.f32 %v500, %v569
        %v571 = vpop.f32.mrb[0].mxu0
        %572 = vdwg.mxu0
        %573 = vmatprep.subr.mxu0 %v226
        %574 = vmatpush1.xpose.msra.mxu0 %v225
        %575 = vmatprep.subr.mxu0 %v236
        %576 = vmatpush1.xpose.msra.mxu0 %v235
        %577 = vmatprep.subr.mxu0 %v246
        %578 = vmatpush1.xpose.msra.mxu0 %v245
        %579 = vmatprep.subr.mxu0 %v256
        %580 = vmatpush1.xpose.msra.mxu0 %v255
        %581 = vmatprep.subr.mxu0 %v266
        %582 = vmatpush1.xpose.msra.mxu0 %v265
        %583 = vmatprep.subr.mxu0 %v276
        %584 = vmatpush1.xpose.msra.mxu0 %v275
        %585 = vmatprep.subr.mxu0 %v286
        %586 = vmatpush1.xpose.msra.mxu0 %v285
        %587 = vmatprep.subr.mxu0 %v296
        %588 = vmatpush1.xpose.msra.mxu0 %v295
        %589 = vmatprep.subr.mxu0 %v306
        %590 = vmatpush1.xpose.msra.mxu0 %v305
        %591 = vmatprep.subr.mxu0 %v316
        %592 = vmatpush1.xpose.msra.mxu0 %v315
        %593 = vmatprep.subr.mxu0 %v326
        %594 = vmatpush1.xpose.msra.mxu0 %v325
        %595 = vmatprep.subr.mxu0 %v336
        %596 = vmatpush1.xpose.msra.mxu0 %v335
        %597 = vmatprep.subr.mxu0 %v346
        %598 = vmatpush1.xpose.msra.mxu0 %v345
        %599 = vmatprep.subr.mxu0 %v356
        %600 = vmatpush1.xpose.msra.mxu0 %v355
        %601 = vmatprep.subr.mxu0 %v366
        %602 = vmatpush1.xpose.msra.mxu0 %v365
        %603 = vmatprep.subr.mxu0 %v376
        %604 = vmatpush1.xpose.msra.mxu0 %v375
        %605 = vmatprep.subr.mxu0 0.0
        %606 = vmatpush1.xpose.msra.mxu0 0.0
        %607 = vmatprep.subr.mxu0 0.0
        %608 = vmatpush1.xpose.msra.mxu0 0.0
        %609 = vmatprep.subr.mxu0 0.0
        %610 = vmatpush1.xpose.msra.mxu0 0.0
        %611 = vmatprep.subr.mxu0 0.0
        %612 = vmatpush1.xpose.msra.mxu0 0.0
        %613 = vmatprep.subr.mxu0 0.0
        %614 = vmatpush1.xpose.msra.mxu0 0.0
        %615 = vmatprep.subr.mxu0 0.0
        %616 = vmatpush1.xpose.msra.mxu0 0.0
        %617 = vmatprep.subr.mxu0 0.0
        %618 = vmatpush1.xpose.msra.mxu0 0.0
        %619 = vmatprep.subr.mxu0 0.0
        %620 = vmatpush1.xpose.msra.mxu0 0.0
        %621 = vmatprep.subr.mxu0 0.0
        %622 = vmatpush1.xpose.msra.mxu0 0.0
        %623 = vmatprep.subr.mxu0 0.0
        %624 = vmatpush1.xpose.msra.mxu0 0.0
        %625 = vmatprep.subr.mxu0 0.0
        %626 = vmatpush1.xpose.msra.mxu0 0.0
        %627 = vmatprep.subr.mxu0 0.0
        %628 = vmatpush1.xpose.msra.mxu0 0.0
        %629 = vmatprep.subr.mxu0 0.0
        %630 = vmatpush1.xpose.msra.mxu0 0.0
        %631 = vmatprep.subr.mxu0 0.0
        %632 = vmatpush1.xpose.msra.mxu0 0.0
        %633 = vmatprep.subr.mxu0 0.0
        %634 = vmatpush1.xpose.msra.mxu0 0.0
        %635 = vmatprep.subr.mxu0 0.0
        %636 = vmatpush1.xpose.msra.mxu0 0.0
        %637 = vmatprep.mubr.f32.mxu0 %v406
        %638 = vmatmul.mubr.f32.gmra.mrb[0].mxu0 %v402
        %v639 = vpop.f32.mrb[0].mxu0
        %v640 = vadd.f32 %v570, %v639
        %v641 = vpop.f32.mrb[0].mxu0
        %642 = vdwg.mxu0
        %643 = vmatprep.subr.mxu0 %v228
        %644 = vmatpush1.xpose.msra.mxu0 %v227
        %645 = vmatprep.subr.mxu0 %v238
        %646 = vmatpush1.xpose.msra.mxu0 %v237
        %647 = vmatprep.subr.mxu0 %v248
        %648 = vmatpush1.xpose.msra.mxu0 %v247
        %649 = vmatprep.subr.mxu0 %v258
        %650 = vmatpush1.xpose.msra.mxu0 %v257
        %651 = vmatprep.subr.mxu0 %v268
        %652 = vmatpush1.xpose.msra.mxu0 %v267
        %653 = vmatprep.subr.mxu0 %v278
        %654 = vmatpush1.xpose.msra.mxu0 %v277
        %655 = vmatprep.subr.mxu0 %v288
        %656 = vmatpush1.xpose.msra.mxu0 %v287
        %657 = vmatprep.subr.mxu0 %v298
        %658 = vmatpush1.xpose.msra.mxu0 %v297
        %659 = vmatprep.subr.mxu0 %v308
        %660 = vmatpush1.xpose.msra.mxu0 %v307
        %661 = vmatprep.subr.mxu0 %v318
        %662 = vmatpush1.xpose.msra.mxu0 %v317
        %663 = vmatprep.subr.mxu0 %v328
        %664 = vmatpush1.xpose.msra.mxu0 %v327
        %665 = vmatprep.subr.mxu0 %v338
        %666 = vmatpush1.xpose.msra.mxu0 %v337
        %667 = vmatprep.subr.mxu0 %v348
        %668 = vmatpush1.xpose.msra.mxu0 %v347
        %669 = vmatprep.subr.mxu0 %v358
        %670 = vmatpush1.xpose.msra.mxu0 %v357
        %671 = vmatprep.subr.mxu0 %v368
        %672 = vmatpush1.xpose.msra.mxu0 %v367
        %673 = vmatprep.subr.mxu0 %v378
        %674 = vmatpush1.xpose.msra.mxu0 %v377
        %675 = vmatprep.subr.mxu0 0.0
        %676 = vmatpush1.xpose.msra.mxu0 0.0
        %677 = vmatprep.subr.mxu0 0.0
        %678 = vmatpush1.xpose.msra.mxu0 0.0
        %679 = vmatprep.subr.mxu0 0.0
        %680 = vmatpush1.xpose.msra.mxu0 0.0
        %681 = vmatprep.subr.mxu0 0.0
        %682 = vmatpush1.xpose.msra.mxu0 0.0
        %683 = vmatprep.subr.mxu0 0.0
        %684 = vmatpush1.xpose.msra.mxu0 0.0
        %685 = vmatprep.subr.mxu0 0.0
        %686 = vmatpush1.xpose.msra.mxu0 0.0
        %687 = vmatprep.subr.mxu0 0.0
        %688 = vmatpush1.xpose.msra.mxu0 0.0
        %689 = vmatprep.subr.mxu0 0.0
        %690 = vmatpush1.xpose.msra.mxu0 0.0
        %691 = vmatprep.subr.mxu0 0.0
        %692 = vmatpush1.xpose.msra.mxu0 0.0
        %693 = vmatprep.subr.mxu0 0.0
        %694 = vmatpush1.xpose.msra.mxu0 0.0
        %695 = vmatprep.subr.mxu0 0.0
        %696 = vmatpush1.xpose.msra.mxu0 0.0
        %697 = vmatprep.subr.mxu0 0.0
        %698 = vmatpush1.xpose.msra.mxu0 0.0
        %699 = vmatprep.subr.mxu0 0.0
        %700 = vmatpush1.xpose.msra.mxu0 0.0
        %701 = vmatprep.subr.mxu0 0.0
        %702 = vmatpush1.xpose.msra.mxu0 0.0
        %703 = vmatprep.subr.mxu0 0.0
        %704 = vmatpush1.xpose.msra.mxu0 0.0
        %705 = vmatprep.subr.mxu0 0.0
        %706 = vmatpush1.xpose.msra.mxu0 0.0
        %707 = vmatprep.mubr.f32.mxu0 %v414
        %708 = vmatmul.mubr.f32.gmra.mrb[0].mxu0 %v410
        %v709 = vpop.f32.mrb[0].mxu0
        %v710 = vadd.f32 %v640, %v709
        %v711 = vpop.f32.mrb[0].mxu0
        %712 = vdwg.mxu0
        %713 = vmatprep.subr.mxu0 %v230
        %714 = vmatpush1.xpose.msra.mxu0 %v229
        %715 = vmatprep.subr.mxu0 %v240
        %716 = vmatpush1.xpose.msra.mxu0 %v239
        %717 = vmatprep.subr.mxu0 %v250
        %718 = vmatpush1.xpose.msra.mxu0 %v249
        %719 = vmatprep.subr.mxu0 %v260
        %720 = vmatpush1.xpose.msra.mxu0 %v259
        %721 = vmatprep.subr.mxu0 %v270
        %722 = vmatpush1.xpose.msra.mxu0 %v269
        %723 = vmatprep.subr.mxu0 %v280
        %724 = vmatpush1.xpose.msra.mxu0 %v279
        %725 = vmatprep.subr.mxu0 %v290
        %726 = vmatpush1.xpose.msra.mxu0 %v289
        %727 = vmatprep.subr.mxu0 %v300
        %728 = vmatpush1.xpose.msra.mxu0 %v299
        %729 = vmatprep.subr.mxu0 %v310
        %730 = vmatpush1.xpose.msra.mxu0 %v309
        %731 = vmatprep.subr.mxu0 %v320
        %732 = vmatpush1.xpose.msra.mxu0 %v319
        %733 = vmatprep.subr.mxu0 %v330
        %734 = vmatpush1.xpose.msra.mxu0 %v329
        %735 = vmatprep.subr.mxu0 %v340
        %736 = vmatpush1.xpose.msra.mxu0 %v339
        %737 = vmatprep.subr.mxu0 %v350
        %738 = vmatpush1.xpose.msra.mxu0 %v349
        %739 = vmatprep.subr.mxu0 %v360
        %740 = vmatpush1.xpose.msra.mxu0 %v359
        %741 = vmatprep.subr.mxu0 %v370
        %742 = vmatpush1.xpose.msra.mxu0 %v369
        %743 = vmatprep.subr.mxu0 %v380
        %744 = vmatpush1.xpose.msra.mxu0 %v379
        %745 = vmatprep.subr.mxu0 0.0
        %746 = vmatpush1.xpose.msra.mxu0 0.0
        %747 = vmatprep.subr.mxu0 0.0
        %748 = vmatpush1.xpose.msra.mxu0 0.0
        %749 = vmatprep.subr.mxu0 0.0
        %750 = vmatpush1.xpose.msra.mxu0 0.0
        %751 = vmatprep.subr.mxu0 0.0
        %752 = vmatpush1.xpose.msra.mxu0 0.0
        %753 = vmatprep.subr.mxu0 0.0
        %754 = vmatpush1.xpose.msra.mxu0 0.0
        %755 = vmatprep.subr.mxu0 0.0
        %756 = vmatpush1.xpose.msra.mxu0 0.0
        %757 = vmatprep.subr.mxu0 0.0
        %758 = vmatpush1.xpose.msra.mxu0 0.0
        %759 = vmatprep.subr.mxu0 0.0
        %760 = vmatpush1.xpose.msra.mxu0 0.0
        %761 = vmatprep.subr.mxu0 0.0
        %762 = vmatpush1.xpose.msra.mxu0 0.0
        %763 = vmatprep.subr.mxu0 0.0
        %764 = vmatpush1.xpose.msra.mxu0 0.0
        %765 = vmatprep.subr.mxu0 0.0
        %766 = vmatpush1.xpose.msra.mxu0 0.0
        %767 = vmatprep.subr.mxu0 0.0
        %768 = vmatpush1.xpose.msra.mxu0 0.0
        %769 = vmatprep.subr.mxu0 0.0
        %770 = vmatpush1.xpose.msra.mxu0 0.0
        %771 = vmatprep.subr.mxu0 0.0
        %772 = vmatpush1.xpose.msra.mxu0 0.0
        %773 = vmatprep.subr.mxu0 0.0
        %774 = vmatpush1.xpose.msra.mxu0 0.0
        %775 = vmatprep.subr.mxu0 0.0
        %776 = vmatpush1.xpose.msra.mxu0 0.0
        %777 = vmatprep.mubr.f32.mxu0 %v422
        %778 = vmatmul.mubr.f32.gmra.mrb[0].mxu0 %v418
        %v779 = vpop.f32.mrb[0].mxu0
        %v780 = vadd.f32 %v710, %v779
        %v781 = vpop.f32.mrb[0].mxu0
        %782 = vdwg.mxu0
        %783 = vst [vmem:[%s217] sm:$0x1] %v780
        %s784 = sand.u32 %s98, 1
        %s785 = scalar_lea.sflag [#allocation4], %s784
        %s786 = sand.u32 %s98, 1
        %s787 = scalar_lea.vmem [#allocation7], %s786
        // Predicated region
        $region37: #{tpu_custom_call.1} parent=27 // pred_check
          %p788 = pneg %p108
        $region38: #{tpu_custom_call.1} parent=27 // pred_check_branch
          %790 = sbr.rel (%p788) target = $region40
        $region39: #{tpu_custom_call.1} parent=27 // pred_region
          %s792 = ssub.s32 16, 16
          %793 = vsyncadd %s785, %s792
          %s794 = smul.addr %s26, 2
          %s795 = sadd.s32 %s27, %s794
          %s796 = smul.addr %s795, 16
          %s797 = scalar_lea.hbm %s2, %s796
          %s799 = sshll.u32 %s787, 4
          %s800 = int_to_ptr.vmem [resolvable:$true] %s799
          %802 = dma.vmem_to_hbm [thread:$0]  %s800, 16, %s797, %s785
        $region40: #{tpu_custom_call.1} parent=27 // pred_fallthru
          _
      $region28: #{tpu_custom_call.1} parent=5 // pred_fallthru
        _
      %p803 = scmp.le.s32.totalorder 2, %s17
      // Predicated region
      $region41: #{tpu_custom_call.1} parent=5 // pred_check
        %p804 = pneg %p803
      $region42: #{tpu_custom_call.1} parent=5 // pred_check_branch
        %806 = sbr.rel (%p804) target = $region44
      $region43: #{tpu_custom_call.1} parent=5 // pred_region
        %s807 = ssub.s32 %s17, 2
        // Predicated region
        $region45: #{tpu_custom_call.1} parent=43 // pred_check
          %p808 = pneg %p114
        $region46: #{tpu_custom_call.1} parent=43 // pred_check_branch
          %810 = sbr.rel (%p808) target = $region48
        $region47: #{tpu_custom_call.1} parent=43 // pred_region
          %s811 = sand.u32 %s99, 1
          %s812 = scalar_lea.sflag [#allocation4], %s811
          %s813 = sand.u32 %s99, 1
          %s814 = scalar_lea.vmem [#allocation7], %s813
          %815 = dma.done %s812, 16
        $region48: #{tpu_custom_call.1} parent=43 // pred_fallthru
          _
      $region44: #{tpu_custom_call.1} parent=5 // pred_fallthru
        _
    $region6: #{tpu_custom_call.1} parent=1 // loop_footer
      %s21 = sadd.s32 1, %s17
    $region7: #{tpu_custom_call.1} parent=1 // loop_footer_branch
      %16 = sbr.rel target = $region3
    $region8: #{tpu_custom_call.1} parent=1 // loop_exit
      _
    %816 = vsyncpa [#allocation3], 1
    %s817 = scalar_lea.sflag [#allocation3], 1
    %818 = vsyncpa %s817, 1
    %819 = vsyncpa [#allocation6], 1
    %s820 = scalar_lea.sflag [#allocation6], 1
    %821 = vsyncpa %s820, 1
    %822 = vsyncpa [#allocation4], 1
    %s823 = scalar_lea.sflag [#allocation4], 1
    %824 = vsyncpa %s823, 1

</llo_original>
